<compile_context>
chip_gen: v7x
topology: tpu7x:2x2x1
jax: 0.10.0
libtpu: 0.0.40
codegen_flags: <defaults>
</compile_context>

<pallas_src>
import functools
import math

import numpy as np
import jax
import jax.numpy as jnp
from jax import lax
from jax.experimental import pallas as pl
from jax.experimental.pallas import tpu as pltpu


# ---------------------------------------------------------------------------
# Host-side interpolation matrices (exact PyTorch semantics)
# ---------------------------------------------------------------------------
def _adaptive_pool_matrix(in_size, out_size):
    """Row-stochastic matrix M (out, in) s.t. M @ x == AdaptiveAvgPool1d(x)."""
    m = np.zeros((out_size, in_size), dtype=np.float32)
    for i in range(out_size):
        start = (i * in_size) // out_size
        end = ((i + 1) * in_size + out_size - 1) // out_size  # ceil
        m[i, start:end] = 1.0 / float(end - start)
    return m


def _bilinear_upsample_matrix(in_size, out_size):
    """M (out, in) s.t. M @ x == F.interpolate(x, mode='bilinear', align_corners=False)."""
    m = np.zeros((out_size, in_size), dtype=np.float32)
    scale = in_size / out_size
    for i in range(out_size):
        src = (i + 0.5) * scale - 0.5
        src = max(src, 0.0)
        j0 = min(int(np.floor(src)), in_size - 1)
        j1 = min(j0 + 1, in_size - 1)
        w1 = src - j0
        m[i, j0] += 1.0 - w1
        m[i, j1] += w1
    return m


# ---------------------------------------------------------------------------
# Kernel 1: separable spatial transform   out[i] = A @ x[i] @ B^T
# (used for AdaptiveAvgPool2d and bilinear nn.Upsample)
# ---------------------------------------------------------------------------
def _separable_resize_kernel(x_ref, a_ref, b_ref, o_ref):
    x = x_ref[0]                                                   # (H, W)
    tmp = lax.dot_general(a_ref[...], x, (((1,), (0,)), ((), ())),
                          preferred_element_type=jnp.float32)      # (OH, W)
    out = lax.dot_general(tmp, b_ref[...], (((1,), (1,)), ((), ())),
                          preferred_element_type=jnp.float32)      # (OH, OW)
    o_ref[0] = out.astype(o_ref.dtype)


def separable_resize(x, a_mat, b_mat):
    """x: (B, C, H, W); a_mat: (OH, H); b_mat: (OW, W) -> (B, C, OH, OW)."""
    B, C, H, W = x.shape
    OH, OW = a_mat.shape[0], b_mat.shape[0]
    xf = x.reshape(B * C, H, W)
    out = pl.pallas_call(
        _separable_resize_kernel,
        out_shape=jax.ShapeDtypeStruct((B * C, OH, OW), x.dtype),
        grid_spec=pltpu.PrefetchScalarGridSpec(
            num_scalar_prefetch=0,
            grid=(B * C,),
            in_specs=[
                pl.BlockSpec((1, H, W), lambda i: (i, 0, 0)),
                pl.BlockSpec((OH, H), lambda i: (0, 0)),
                pl.BlockSpec((OW, W), lambda i: (0, 0)),
            ],
            out_specs=pl.BlockSpec((1, OH, OW), lambda i: (i, 0, 0)),
        ),
        compiler_params=pltpu.CompilerParams(
            dimension_semantics=("parallel",)),
    )(xf, a_mat, b_mat)
    return out.reshape(B, C, OH, OW)


# ---------------------------------------------------------------------------
# Kernel 2: fused multi-head cross-attention
#   grid = (B, num_heads, num_kv_tiles); heads and kv tiles are reductions.
#   Per step: project K/V tile, online-softmax update, and at the last kv tile
#   fold this head's output through its slice of the projection matrix.
# ---------------------------------------------------------------------------
def _mha_kernel(q_ref, kv_ref, wq_ref, wk_ref, wv_ref, wp_ref, bias_ref, o_ref,
                qh_sc, m_sc, l_sc, yacc_sc, oacc_sc, *, scale):
    h = pl.program_id(1)
    kv = pl.program_id(2)
    n_heads = pl.num_programs(1)
    n_kv = pl.num_programs(2)

    @pl.when(jnp.logical_and(h == 0, kv == 0))
    def _():  # new batch element: reset the output-projection accumulator
        oacc_sc[...] = jnp.zeros_like(oacc_sc)

    @pl.when(kv == 0)
    def _():  # new head: project Q once, reset online-softmax state
        qh_sc[...] = lax.dot_general(
            q_ref[0], wq_ref[0], (((1,), (1,)), ((), ())),
            preferred_element_type=jnp.float32)                     # (Sq, hd)
        m_sc[...] = jnp.full_like(m_sc, -jnp.inf)
        l_sc[...] = jnp.zeros_like(l_sc)
        yacc_sc[...] = jnp.zeros_like(yacc_sc)

    kv_x = kv_ref[0]                                                # (tk, C)
    k_h = lax.dot_general(kv_x, wk_ref[0], (((1,), (1,)), ((), ())),
                          preferred_element_type=jnp.float32)       # (tk, hd)
    v_h = lax.dot_general(kv_x, wv_ref[0], (((1,), (1,)), ((), ())),
                          preferred_element_type=jnp.float32)       # (tk, hd)

    s = lax.dot_general(qh_sc[...], k_h, (((1,), (1,)), ((), ())),
                        preferred_element_type=jnp.float32) * scale  # (Sq, tk)

    m_new = jnp.maximum(m_sc[...], s.max(axis=-1, keepdims=True))
    alpha = jnp.exp(m_sc[...] - m_new)
    p = jnp.exp(s - m_new)
    l_sc[...] = alpha * l_sc[...] + p.sum(axis=-1, keepdims=True)
    yacc_sc[...] = alpha * yacc_sc[...] + jnp.dot(
        p, v_h, preferred_element_type=jnp.float32)
    m_sc[...] = m_new

    @pl.when(kv == n_kv - 1)
    def _():  # finalize this head and fold into the projected output
        y_h = yacc_sc[...] / l_sc[...]                              # (Sq, hd)
        oacc_sc[...] += jnp.dot(y_h, wp_ref[0],
                                preferred_element_type=jnp.float32)  # (Sq, C)

    @pl.when(jnp.logical_and(h == n_heads - 1, kv == n_kv - 1))
    def _():  # last head of this batch element: add bias, write output tile
        o_ref[0] = (oacc_sc[...] + bias_ref[...]).astype(o_ref.dtype)


def _pick_kv_tile(sk, target=512):
    for t in range(min(sk, target), 7, -1):
        if sk % t == 0 and t % 8 == 0:
            return t
    return sk  # fall back to a single full-extent block


def multi_head_cross_attention(q_seq, kv_seq, wq, wk, wv, wp, bp, num_heads,
                               qk_scale=None):
    """q_seq: (B, Sq, C), kv_seq: (B, Sk, C); weights are PyTorch nn.Linear
    layout (out, in); returns proj(softmax(QK^T * scale) V) + bias."""
    B, Sq, C = q_seq.shape
    _, Sk, _ = kv_seq.shape
    hd = C // num_heads
    assert hd * num_heads == C
    scale = qk_scale if qk_scale is not None else hd ** (-0.5)

    kv_tile = _pick_kv_tile(Sk)
    n_kv = Sk // kv_tile

    # Group weights per head so every BlockSpec has full-extent last two dims.
    wq_h = wq.reshape(num_heads, hd, C)        # rows h*hd:(h+1)*hd of Wq
    wk_h = wk.reshape(num_heads, hd, C)
    wv_h = wv.reshape(num_heads, hd, C)
    wp_h = wp.T.reshape(num_heads, hd, C)      # columns of Wproj, per head
    bp2 = bp.reshape(1, C)

    kernel = functools.partial(_mha_kernel, scale=scale)

    return pl.pallas_call(
        kernel,
        out_shape=jax.ShapeDtypeStruct((B, Sq, C), q_seq.dtype),
        grid_spec=pltpu.PrefetchScalarGridSpec(
            num_scalar_prefetch=0,
            grid=(B, num_heads, n_kv),
            in_specs=[
                pl.BlockSpec((1, Sq, C), lambda b, h, k: (b, 0, 0)),
                pl.BlockSpec((1, kv_tile, C), lambda b, h, k: (b, k, 0)),
                pl.BlockSpec((1, hd, C), lambda b, h, k: (h, 0, 0)),
                pl.BlockSpec((1, hd, C), lambda b, h, k: (h, 0, 0)),
                pl.BlockSpec((1, hd, C), lambda b, h, k: (h, 0, 0)),
                pl.BlockSpec((1, hd, C), lambda b, h, k: (h, 0, 0)),
                pl.BlockSpec((1, C), lambda b, h, k: (0, 0)),
            ],
            out_specs=pl.BlockSpec((1, Sq, C), lambda b, h, k: (b, 0, 0)),
            scratch_shapes=[
                pltpu.VMEM((Sq, hd), jnp.float32),   # Q for current head
                pltpu.VMEM((Sq, 1), jnp.float32),    # running max
                pltpu.VMEM((Sq, 1), jnp.float32),    # running denominator
                pltpu.VMEM((Sq, hd), jnp.float32),   # running P @ V
                pltpu.VMEM((Sq, C), jnp.float32),    # projected output acc
            ],
        ),
        compiler_params=pltpu.CompilerParams(
            dimension_semantics=("parallel", "arbitrary", "arbitrary")),
    )(q_seq, kv_seq, wq_h, wk_h, wv_h, wp_h, bp2)


# ---------------------------------------------------------------------------
# Full CrossAttention forward
# ---------------------------------------------------------------------------
def cross_attention_forward(u1, u2, params, *, num_heads=8, qk_scale=None,
                            resized_img_size=40):
    # TODO(synk): attn_drop / proj_drop / resid_pdrop are training-time
    # dropouts; this is the eval-mode forward so they are identity.
    B, C, H2, W2 = u2.shape
    _, C1, H1, W1 = u1.shape
    assert C1 == C
    R = resized_img_size
    S = R * R

    # AdaptiveAvgPool2d((R, R)) as separable matrices.
    q_img = separable_resize(u1,
                             jnp.asarray(_adaptive_pool_matrix(H1, R)),
                             jnp.asarray(_adaptive_pool_matrix(W1, R)))
    kv_img = separable_resize(u2,
                              jnp.asarray(_adaptive_pool_matrix(H2, R)),
                              jnp.asarray(_adaptive_pool_matrix(W2, R)))

    # NCHW -> (B, S, C) sequences (u1 builds Q; u2 builds K, V).
    q_seq = q_img.transpose(0, 2, 3, 1).reshape(B, S, C)
    kv_seq = kv_img.transpose(0, 2, 3, 1).reshape(B, S, C)

    y_seq = multi_head_cross_attention(
        q_seq, kv_seq, params["wq"], params["wk"], params["wv"],
        params["wp"], params["bp"], num_heads, qk_scale)

    y_img = y_seq.transpose(0, 2, 1).reshape(B, C, R, R)

    # nn.Upsample(size=(H2, W2), mode='bilinear', align_corners=False).
    y_up = separable_resize(y_img,
                            jnp.asarray(_bilinear_upsample_matrix(R, H2)),
                            jnp.asarray(_bilinear_upsample_matrix(R, W2)))

    # torch.cat([initial_input, y], dim=1): pure copy, left to XLA (a Pallas
    # copy kernel staged through VMEM is strictly slower per the perf review).
    return jnp.concatenate([u2, y_up], axis=1)


# ---------------------------------------------------------------------------
# Pure-JAX reference (no Pallas) for correctness checking
# ---------------------------------------------------------------------------
def cross_attention_reference(u1, u2, params, *, num_heads=8, qk_scale=None,
                              resized_img_size=40):
    B, C, H2, W2 = u2.shape
    _, _, H1, W1 = u1.shape
    R = resized_img_size
    S = R * R
    hd = C // num_heads
    scale = qk_scale if qk_scale is not None else hd ** (-0.5)

    q_img = jnp.einsum('oh,bchw,pw->bcop', jnp.asarray(_adaptive_pool_matrix(H1, R)),
                       u1, jnp.asarray(_adaptive_pool_matrix(W1, R)))
    kv_img = jnp.einsum('oh,bchw,pw->bcop', jnp.asarray(_adaptive_pool_matrix(H2, R)),
                        u2, jnp.asarray(_adaptive_pool_matrix(W2, R)))
    q = q_img.transpose(0, 2, 3, 1).reshape(B, S, C)
    kv = kv_img.transpose(0, 2, 3, 1).reshape(B, S, C)

    Q = q @ params["wq"].T
    K = kv @ params["wk"].T
    V = kv @ params["wv"].T
    to_heads = lambda x: x.reshape(B, S, num_heads, hd).transpose(0, 2, 1, 3)
    Qh, Kh, Vh = to_heads(Q), to_heads(K), to_heads(V)
    attn = jax.nn.softmax(jnp.einsum('bhqd,bhkd->bhqk', Qh, Kh) * scale, axis=-1)
    Y = jnp.einsum('bhqk,bhkd->bhqd', attn, Vh).transpose(0, 2, 1, 3).reshape(B, S, C)
    Y = Y @ params["wp"].T + params["bp"]

    y_img = Y.transpose(0, 2, 1).reshape(B, C, R, R)
    y_up = jnp.einsum('oh,bchw,pw->bcop', jnp.asarray(_bilinear_upsample_matrix(R, H2)),
                      y_img, jnp.asarray(_bilinear_upsample_matrix(R, W2)))
    return jnp.concatenate([u2, y_up], axis=1)


if __name__ == "__main__":
    key = jax.random.PRNGKey(0)
    kq, kk, kv_, kp, kb, k1, k2 = jax.random.split(key, 7)

    B, dim, num_heads = 2, 64, 8
    H1 = W1 = 48   # u1 -> query path
    H2 = W2 = 64   # u2 -> key/value path and skip connection

    u1 = jax.random.normal(k1, (B, dim, H1, W1), dtype=jnp.float32)
    u2 = jax.random.normal(k2, (B, dim, H2, W2), dtype=jnp.float32)

    params = {
        "wq": jax.random.normal(kq, (dim, dim), jnp.float32) / math.sqrt(dim),
        "wk": jax.random.normal(kk, (dim, dim), jnp.float32) / math.sqrt(dim),
        "wv": jax.random.normal(kv_, (dim, dim), jnp.float32) / math.sqrt(dim),
        "wp": jax.random.normal(kp, (dim, dim), jnp.float32) / math.sqrt(dim),
        "bp": jax.random.normal(kb, (dim,), jnp.float32) * 0.02,
    }

    out = cross_attention_forward(u1, u2, params, num_heads=num_heads)
    out = jax.block_until_ready(out)

    ref = cross_attention_reference(u1, u2, params, num_heads=num_heads)
    ref = jax.block_until_ready(ref)

    assert out.shape == (B, 2 * dim, H2, W2), (out.shape, (B, 2 * dim, H2, W2))
    # Skip-connection half of the channels must be bit-exact.
    assert jnp.array_equal(out[:, :dim], u2), "skip-connection channels differ"
    # Attention half: tolerate MXU (bf16-multiply) precision differences.
    assert bool(jnp.isfinite(out).all()), "non-finite values in output"
    assert jnp.allclose(out, ref, atol=5e-2, rtol=5e-2), (
        "mismatch vs JAX reference; max abs diff = "
        f"{float(jnp.max(jnp.abs(out - ref)))}")

    print("KERNEL_OK")
</pallas_src>

<mosaic_0001>
module attributes {stable_mosaic.version = 11 : i64} {
  func.func @_separable_resize_kernel(%arg0: i32, %arg1: memref<1x48x48xf32, #tpu.memory_space<vmem>>, %arg2: memref<40x48xf32, #tpu.memory_space<vmem>>, %arg3: memref<40x48xf32, #tpu.memory_space<vmem>>, %arg4: memref<1x40x40xf32, #tpu.memory_space<vmem>>) attributes {dimension_semantics = [#tpu.dimension_semantics<parallel>], iteration_bounds = array<i64: 128>, scalar_prefetch = 0 : i64, scratch_operands = 0 : i64, tpu.core_type = #tpu.core_type<tc>, window_params = [{transform_indices = @transform_0, window_bounds = array<i64: 1, 48, 48>}, {pipeline_mode = #tpu.pipeline_mode<synchronous>, transform_indices = @transform_1, window_bounds = array<i64: 40, 48>}, {pipeline_mode = #tpu.pipeline_mode<synchronous>, transform_indices = @transform_2, window_bounds = array<i64: 40, 48>}, {transform_indices = @transform_3, window_bounds = array<i64: 1, 40, 40>}]} {
    %c0 = arith.constant 0 : index
    %c0_0 = arith.constant 0 : index
    %c0_1 = arith.constant 0 : index
    %0 = vector.load %arg1[%c0, %c0_0, %c0_1] : memref<1x48x48xf32, #tpu.memory_space<vmem>>, vector<1x48x48xf32>
    %1 = vector.shape_cast %0 : vector<1x48x48xf32> to vector<48x48xf32>
    %c0_2 = arith.constant 0 : index
    %c0_3 = arith.constant 0 : index
    %2 = vector.load %arg2[%c0_2, %c0_3] : memref<40x48xf32, #tpu.memory_space<vmem>>, vector<40x48xf32>
    %cst = arith.constant dense<0.000000e+00> : vector<40x48xf32>
    %3 = tpu.matmul %2, %1, %cst {dimension_numbers = #tpu.dot_dimension_numbers<[1], [0], [0], [1], [0, 0, 1, 1], [], []>} : vector<40x48xf32>, vector<48x48xf32>, vector<40x48xf32> -> vector<40x48xf32>
    %c0_4 = arith.constant 0 : index
    %c0_5 = arith.constant 0 : index
    %4 = vector.load %arg3[%c0_4, %c0_5] : memref<40x48xf32, #tpu.memory_space<vmem>>, vector<40x48xf32>
    %cst_6 = arith.constant dense<0.000000e+00> : vector<40x40xf32>
    %5 = tpu.matmul %3, %4, %cst_6 {dimension_numbers = #tpu.dot_dimension_numbers<[1], [1], [0], [0], [0, 0, 1, 0], [], []>} : vector<40x48xf32>, vector<40x48xf32>, vector<40x40xf32> -> vector<40x40xf32>
    %c0_7 = arith.constant 0 : index
    %c0_8 = arith.constant 0 : index
    %c0_9 = arith.constant 0 : index
    %6 = vector.load %arg4[%c0_7, %c0_8, %c0_9] : memref<1x40x40xf32, #tpu.memory_space<vmem>>, vector<1x40x40xf32>
    %7 = vector.shape_cast %6 : vector<1x40x40xf32> to vector<40x40xf32>
    %8 = vector.shape_cast %5 : vector<40x40xf32> to vector<1x40x40xf32>
    tpu.vector_store %arg4[%c0_7, %c0_8, %c0_9], %8 {strides = array<i32>} : memref<1x40x40xf32, #tpu.memory_space<vmem>>, vector<1x40x40xf32>,
    return
  }
  func.func @transform_0(%arg0: i32) -> (i32, i32, i32) {
    %c0_i32 = arith.constant 0 : i32
    %c0_i32_0 = arith.constant 0 : i32
    %c0_i32_1 = arith.constant 0 : i32
    return %arg0, %c0_i32, %c0_i32_0 : i32, i32, i32
  }
  func.func @transform_1(%arg0: i32) -> (i32, i32) {
    %c0_i32 = arith.constant 0 : i32
    %c0_i32_0 = arith.constant 0 : i32
    %c0_i32_1 = arith.constant 0 : i32
    return %c0_i32, %c0_i32_0 : i32, i32
  }
  func.func @transform_2(%arg0: i32) -> (i32, i32) {
    %c0_i32 = arith.constant 0 : i32
    %c0_i32_0 = arith.constant 0 : i32
    %c0_i32_1 = arith.constant 0 : i32
    return %c0_i32, %c0_i32_0 : i32, i32
  }
  func.func @transform_3(%arg0: i32) -> (i32, i32, i32) {
    %c0_i32 = arith.constant 0 : i32
    %c0_i32_0 = arith.constant 0 : i32
    %c0_i32_1 = arith.constant 0 : i32
    return %arg0, %c0_i32, %c0_i32_0 : i32, i32, i32
  }
}

</mosaic_0001>

<llo_original>
// kernel: tpu_custom_call.1
$region0: #{tpu_custom_call.1}
  #allocation0 [shape = 'u32[]', space=smem, size = 0x4, offset = 0x4, fixed_abs, tag = 'smem constant byte address 0x4 - core index']
  #allocation1 [shape = 'u32[144,128]{1,0:T(1,128)}', space=vmem, size = 0x12000, scoped, tag = 'internal scratch']
  %s0 = inlined_call_operand.vmem [shape: f32[128,48,48], index: 0, kind: input, shape index: {}]
  %s1 = inlined_call_operand.vmem [shape: f32[40,48], index: 1, kind: input, shape index: {}]
  %s2 = inlined_call_operand.vmem [shape: f32[40,48], index: 2, kind: input, shape index: {}]
  %s3 = inlined_call_operand.vmem [shape: f32[128,40,40], index: 3, kind: output, shape index: {}]
  %s4 = sld [smem:[#allocation0]]
  $region45: #{tpu_custom_call.1} parent=0
    _
  %s6 = ssub.s32 1, %s4
  %s7 = scalar_select 0, %s6, %s4
  loop: start=0, step=1, limit=130
  $region2: #{tpu_custom_call.1} parent=0 // loop_pre_header
    _
  $region3: #{tpu_custom_call.1} parent=0 // loop_header
    %s9 = sphi 0, %s13
    %p10 = scmp.ge.s32.totalorder %s9, 130
    %s19 = sphi 0, %s21
    %s22 = sphi 0, %s19
    %s23 = sphi 0, %s22
    %s39 = sphi 0, %s23
    %s43 = sphi 0, %s43
    %s45 = sphi 0, %s43
    %s46 = sphi 0, %s45
    %s60 = sphi 0, %s46
    %s64 = sphi 0, %s64
    %s66 = sphi 0, %s64
    %s67 = sphi 0, %s66
    %s81 = sphi 0, %s67
    %s87 = sphi 0, %s89
    %s90 = sphi 0, %s87
    %s91 = sphi 0, %s90
    %s107 = sphi 0, %s91
  $region4: #{tpu_custom_call.1} parent=0 // loop_header_branch
    %12 = sbr.rel (%p10) target = $region8
  $region5: #{tpu_custom_call.1} parent=0 // loop_body
    %s14 = ssub.s32 %s9, 1
    %s15 = ssub.s32 %s9, 2
    %s16 = sadd.s32 %s9, 1
    %s17 = ssub.s32 %s9, %s16
    %p18 = scmp.eq.s32.totalorder %s17, 0
    %s20 = sadd.s32 %s19, 1
    %s21 = scalar_select %p18, %s19, %s20
    %p24 = pneg %p18
    %p25 = scmp.eq.s32.totalorder %s9, 127
    %p26 = por %p24, %p25
    %p27 = scmp.ne.s32.totalorder %s19, %s22
    %p28 = scmp.eq.s32.totalorder %s9, 0
    %p29 = por %p27, %p28
    %p30 = scmp.ne.s32.totalorder %s19, %s22
    %p31 = scmp.eq.s32.totalorder %s14, 127
    %p32 = por %p30, %p31
    %p33 = scmp.ne.s32.totalorder %s22, %s23
    %p34 = scmp.eq.s32.totalorder %s14, 0
    %p35 = por %p33, %p34
    %p36 = scmp.ne.s32.totalorder %s22, %s23
    %p37 = scmp.eq.s32.totalorder %s15, 127
    %p38 = por %p36, %p37
    %p40 = scmp.ne.s32.totalorder %s23, %s39
    %p41 = scmp.eq.s32.totalorder %s15, 0
    %p42 = por %p40, %p41
    %s44 = sadd.s32 %s43, 1
    %p47 = scmp.eq.s32.totalorder %s9, 127
    %p48 = scmp.ne.s32.totalorder %s43, %s45
    %p49 = scmp.eq.s32.totalorder %s9, 0
    %p50 = por %p48, %p49
    %p51 = scmp.ne.s32.totalorder %s43, %s45
    %p52 = scmp.eq.s32.totalorder %s14, 127
    %p53 = por %p51, %p52
    %p54 = scmp.ne.s32.totalorder %s45, %s46
    %p55 = scmp.eq.s32.totalorder %s14, 0
    %p56 = por %p54, %p55
    %p57 = scmp.ne.s32.totalorder %s45, %s46
    %p58 = scmp.eq.s32.totalorder %s15, 127
    %p59 = por %p57, %p58
    %p61 = scmp.ne.s32.totalorder %s46, %s60
    %p62 = scmp.eq.s32.totalorder %s15, 0
    %p63 = por %p61, %p62
    %s65 = sadd.s32 %s64, 1
    %p68 = scmp.eq.s32.totalorder %s9, 127
    %p69 = scmp.ne.s32.totalorder %s64, %s66
    %p70 = scmp.eq.s32.totalorder %s9, 0
    %p71 = por %p69, %p70
    %p72 = scmp.ne.s32.totalorder %s64, %s66
    %p73 = scmp.eq.s32.totalorder %s14, 127
    %p74 = por %p72, %p73
    %p75 = scmp.ne.s32.totalorder %s66, %s67
    %p76 = scmp.eq.s32.totalorder %s14, 0
    %p77 = por %p75, %p76
    %p78 = scmp.ne.s32.totalorder %s66, %s67
    %p79 = scmp.eq.s32.totalorder %s15, 127
    %p80 = por %p78, %p79
    %p82 = scmp.ne.s32.totalorder %s67, %s81
    %p83 = scmp.eq.s32.totalorder %s15, 0
    %p84 = por %p82, %p83
    %s85 = ssub.s32 %s9, %s16
    %p86 = scmp.eq.s32.totalorder %s85, 0
    %s88 = sadd.s32 %s87, 1
    %s89 = scalar_select %p86, %s87, %s88
    %p92 = pneg %p86
    %p93 = scmp.eq.s32.totalorder %s9, 127
    %p94 = por %p92, %p93
    %p95 = scmp.ne.s32.totalorder %s87, %s90
    %p96 = scmp.eq.s32.totalorder %s9, 0
    %p97 = por %p95, %p96
    %p98 = scmp.ne.s32.totalorder %s87, %s90
    %p99 = scmp.eq.s32.totalorder %s14, 127
    %p100 = por %p98, %p99
    %p101 = scmp.ne.s32.totalorder %s90, %s91
    %p102 = scmp.eq.s32.totalorder %s14, 0
    %p103 = por %p101, %p102
    %p104 = scmp.ne.s32.totalorder %s90, %s91
    %p105 = scmp.eq.s32.totalorder %s15, 127
    %p106 = por %p104, %p105
    %p108 = scmp.ne.s32.totalorder %s91, %s107
    %p109 = scmp.eq.s32.totalorder %s15, 0
    %p110 = por %p108, %p109
    %p111 = scmp.le.s32.totalorder 1, %s9
    %p112 = scmp.lt.s32.totalorder %s9, 129
    %p113 = pnand %p111, %p112
    %p114 = pneg %p113
    // Predicated region
    $region9: #{tpu_custom_call.1} parent=5 // pred_check
      _
    $region10: #{tpu_custom_call.1} parent=5 // pred_check_branch
      %116 = sbr.rel (%p113) target = $region12
    $region11: #{tpu_custom_call.1} parent=5 // pred_region
      %s117 = ssub.s32 %s9, 1
      // Predicated region
      $region13: #{tpu_custom_call.1} parent=11 // pred_check
        %p118 = pneg %p56
      $region14: #{tpu_custom_call.1} parent=11 // pred_check_branch
        %120 = sbr.rel (%p118) target = $region16
      $region15: #{tpu_custom_call.1} parent=11 // pred_region
        _
      $region16: #{tpu_custom_call.1} parent=11 // pred_fallthru
        _
      // Predicated region
      $region17: #{tpu_custom_call.1} parent=11 // pred_check
        %p121 = pneg %p77
      $region18: #{tpu_custom_call.1} parent=11 // pred_check_branch
        %123 = sbr.rel (%p121) target = $region20
      $region19: #{tpu_custom_call.1} parent=11 // pred_region
        _
      $region20: #{tpu_custom_call.1} parent=11 // pred_fallthru
        _
    $region12: #{tpu_custom_call.1} parent=5 // pred_fallthru
      _
    %p124 = scmp.lt.s32.totalorder %s9, 128
    // Predicated region
    $region21: #{tpu_custom_call.1} parent=5 // pred_check
      %p125 = pneg %p124
    $region22: #{tpu_custom_call.1} parent=5 // pred_check_branch
      %127 = sbr.rel (%p125) target = $region24
    $region23: #{tpu_custom_call.1} parent=5 // pred_region
      // Predicated region
      $region25: #{tpu_custom_call.1} parent=23 // pred_check
        %p128 = pneg %p29
      $region26: #{tpu_custom_call.1} parent=23 // pred_check_branch
        %130 = sbr.rel (%p128) target = $region28
      $region27: #{tpu_custom_call.1} parent=23 // pred_region
        %p131 = scmp.lt.s32.totalorder %s9, 127
        %s132 = scalar_select %p131, %s9, 127
        %s133 = smul.addr %s132, 6
        %s134 = smul.addr %s133, 8
        %s135 = scalar_lea.vmem %s0, %s134
      $region28: #{tpu_custom_call.1} parent=23 // pred_fallthru
        _
    $region24: #{tpu_custom_call.1} parent=5 // pred_fallthru
      _
    %p136 = scmp.le.s32.totalorder 1, %s9
    %p137 = scmp.lt.s32.totalorder %s9, 129
    %p138 = pnand %p136, %p137
    %p139 = pneg %p138
    // Predicated region
    $region29: #{tpu_custom_call.1} parent=5 // pred_check
      _
    $region30: #{tpu_custom_call.1} parent=5 // pred_check_branch
      %141 = sbr.rel (%p138) target = $region32
    $region31: #{tpu_custom_call.1} parent=5 // pred_region
      %s142 = ssub.s32 %s9, 1
      %p143 = scmp.lt.s32.totalorder %s14, 127
      %s144 = scalar_select %p143, %s14, 127
      %s145 = smul.addr %s144, 6
      %s146 = smul.addr %s145, 8
      %s147 = scalar_lea.vmem %s0, %s146
      %p148 = pneg %p35
      %p149 = pneg %p32
      %p150 = pneg %p56
      %p151 = pneg %p53
      %p152 = pneg %p77
      %p153 = pneg %p74
      %p154 = pneg %p103
      %p155 = pneg %p100
      %p156 = scmp.lt.s32.totalorder %s14, 127
      %s157 = scalar_select %p156, %s14, 127
      %s158 = smul.addr %s157, 5
      %s159 = smul.addr %s158, 8
      %s160 = scalar_lea.vmem %s3, %s159
      %p161 = scmp.lt.s32.totalorder %s14, 127
      %s162 = scalar_select %p161, %s14, 127
      %s163 = smul.addr %s162, 6
      %s164 = smul.addr %s163, 8
      %s165 = scalar_lea.vmem %s0, %s164
      %p166 = scmp.lt.s32.totalorder %s14, 127
      %s167 = scalar_select %p166, %s14, 127
      %s168 = smul.addr %s167, 5
      %s169 = smul.addr %s168, 8
      %s170 = scalar_lea.vmem %s3, %s169
      %v171 = vld [vmem:[%s165] sm:$0xff]
      %v172 = vld [vmem:[%s165 + $0x8] sm:$0xff]
      %v173 = vld [vmem:[%s165 + $0x10] sm:$0xff]
      %v174 = vld [vmem:[%s165 + $0x18] sm:$0xff]
      %v175 = vld [vmem:[%s165 + $0x20] sm:$0xff]
      %v176 = vld [vmem:[%s165 + $0x28] sm:$0xff]
      %v177 = vld [vmem:[%s1] sm:$0xff]
      %v178 = vld [vmem:[%s1 + $0x8] sm:$0xff]
      %v179 = vld [vmem:[%s1 + $0x10] sm:$0xff]
      %v180 = vld [vmem:[%s1 + $0x18] sm:$0xff]
      %v181 = vld [vmem:[%s1 + $0x20] sm:$0xff]
      %vm182 = vcmask 392192
      %v184 = vsel %vm182, %v177, 0
      %v187 = vsel %vm182, %v178, 0
      %v190 = vsel %vm182, %v179, 0
      %v193 = vsel %vm182, %v180, 0
      %v196 = vsel %vm182, %v181, 0
      %198 = vmatprep.subr.mxu0 0.0
      %199 = vmatpush1.msra.mxu0 %v171
      %200 = vmatprep.subr.mxu0 0.0
      %201 = vmatpush1.msra.mxu0 %v172
      %202 = vmatprep.subr.mxu0 0.0
      %203 = vmatpush1.msra.mxu0 %v173
      %204 = vmatprep.subr.mxu0 0.0
      %205 = vmatpush1.msra.mxu0 %v174
      %206 = vmatprep.subr.mxu0 0.0
      %207 = vmatpush1.msra.mxu0 %v175
      %208 = vmatprep.subr.mxu0 0.0
      %209 = vmatpush1.msra.mxu0 %v176
      %210 = vmatprep.subr.mxu0 0.0
      %211 = vmatpush1.msra.mxu0 0.0
      %212 = vmatprep.subr.mxu0 0.0
      %213 = vmatpush1.msra.mxu0 0.0
      %214 = vmatprep.subr.mxu0 0.0
      %215 = vmatpush1.msra.mxu0 0.0
      %216 = vmatprep.subr.mxu0 0.0
      %217 = vmatpush1.msra.mxu0 0.0
      %218 = vmatprep.subr.mxu0 0.0
      %219 = vmatpush1.msra.mxu0 0.0
      %220 = vmatprep.subr.mxu0 0.0
      %221 = vmatpush1.msra.mxu0 0.0
      %222 = vmatprep.subr.mxu0 0.0
      %223 = vmatpush1.msra.mxu0 0.0
      %224 = vmatprep.subr.mxu0 0.0
      %225 = vmatpush1.msra.mxu0 0.0
      %226 = vmatprep.subr.mxu0 0.0
      %227 = vmatpush1.msra.mxu0 0.0
      %228 = vmatprep.subr.mxu0 0.0
      %229 = vmatpush1.msra.mxu0 0.0
      %230 = vmatprep.subr.mxu0 0.0
      %231 = vmatpush1.msra.mxu0 0.0
      %232 = vmatprep.subr.mxu0 0.0
      %233 = vmatpush1.msra.mxu0 0.0
      %234 = vmatprep.subr.mxu0 0.0
      %235 = vmatpush1.msra.mxu0 0.0
      %236 = vmatprep.subr.mxu0 0.0
      %237 = vmatpush1.msra.mxu0 0.0
      %238 = vmatprep.subr.mxu0 0.0
      %239 = vmatpush1.msra.mxu0 0.0
      %240 = vmatprep.subr.mxu0 0.0
      %241 = vmatpush1.msra.mxu0 0.0
      %242 = vmatprep.subr.mxu0 0.0
      %243 = vmatpush1.msra.mxu0 0.0
      %244 = vmatprep.subr.mxu0 0.0
      %245 = vmatpush1.msra.mxu0 0.0
      %246 = vmatprep.subr.mxu0 0.0
      %247 = vmatpush1.msra.mxu0 0.0
      %248 = vmatprep.subr.mxu0 0.0
      %249 = vmatpush1.msra.mxu0 0.0
      %250 = vmatprep.subr.mxu0 0.0
      %251 = vmatpush1.msra.mxu0 0.0
      %252 = vmatprep.subr.mxu0 0.0
      %253 = vmatpush1.msra.mxu0 0.0
      %254 = vmatprep.subr.mxu0 0.0
      %255 = vmatpush1.msra.mxu0 0.0
      %256 = vmatprep.subr.mxu0 0.0
      %257 = vmatpush1.msra.mxu0 0.0
      %258 = vmatprep.subr.mxu0 0.0
      %259 = vmatpush1.msra.mxu0 0.0
      %260 = vmatprep.subr.mxu0 0.0
      %261 = vmatpush1.msra.mxu0 0.0
      %262 = vmatprep.mubr.f32.mxu0 0.0
      %263 = vmatmul.mubr.f32.gmra.mrb[0].mxu0 %v184
      %v264 = vpop.f32.mrb[0].mxu0
      %v265 = vadd.f32 0.0, %v264
      %v266 = vpop.f32.mrb[0].mxu0
      %267 = vmatprep.mubr.f32.mxu0 0.0
      %268 = vmatmul.mubr.f32.gmra.mrb[0].mxu0 %v187
      %v269 = vpop.f32.mrb[0].mxu0
      %v270 = vadd.f32 0.0, %v269
      %v271 = vpop.f32.mrb[0].mxu0
      %272 = vmatprep.mubr.f32.mxu0 0.0
      %273 = vmatmul.mubr.f32.gmra.mrb[0].mxu0 %v190
      %v274 = vpop.f32.mrb[0].mxu0
      %v275 = vadd.f32 0.0, %v274
      %v276 = vpop.f32.mrb[0].mxu0
      %277 = vmatprep.mubr.f32.mxu0 0.0
      %278 = vmatmul.mubr.f32.gmra.mrb[0].mxu0 %v193
      %v279 = vpop.f32.mrb[0].mxu0
      %v280 = vadd.f32 0.0, %v279
      %v281 = vpop.f32.mrb[0].mxu0
      %282 = vmatprep.mubr.f32.mxu0 0.0
      %283 = vmatmul.mubr.f32.gmra.mrb[0].mxu0 %v196
      %v284 = vpop.f32.mrb[0].mxu0
      %v285 = vadd.f32 0.0, %v284
      %v286 = vpop.f32.mrb[0].mxu0
      %287 = vdwg.mxu0
      %v288 = vld [vmem:[%s2] sm:$0xff]
      %v289 = vld [vmem:[%s2 + $0x8] sm:$0xff]
      %v290 = vld [vmem:[%s2 + $0x10] sm:$0xff]
      %v291 = vld [vmem:[%s2 + $0x18] sm:$0xff]
      %v292 = vld [vmem:[%s2 + $0x20] sm:$0xff]
      %v294 = vsel %vm182, %v265, 0
      %v297 = vsel %vm182, %v270, 0
      %v300 = vsel %vm182, %v275, 0
      %v303 = vsel %vm182, %v280, 0
      %v306 = vsel %vm182, %v285, 0
      %v309 = vsel %vm182, %v288, 0
      %v312 = vsel %vm182, %v289, 0
      %v315 = vsel %vm182, %v290, 0
      %v318 = vsel %vm182, %v291, 0
      %v321 = vsel %vm182, %v292, 0
      %323 = vmatprep.subr.mxu0 0.0
      %324 = vmatpush1.xpose.msra.mxu0 %v309
      %325 = vmatprep.subr.mxu0 0.0
      %326 = vmatpush1.xpose.msra.mxu0 %v312
      %327 = vmatprep.subr.mxu0 0.0
      %328 = vmatpush1.xpose.msra.mxu0 %v315
      %329 = vmatprep.subr.mxu0 0.0
      %330 = vmatpush1.xpose.msra.mxu0 %v318
      %331 = vmatprep.subr.mxu0 0.0
      %332 = vmatpush1.xpose.msra.mxu0 %v321
      %333 = vmatprep.subr.mxu0 0.0
      %334 = vmatpush1.xpose.msra.mxu0 0.0
      %335 = vmatprep.subr.mxu0 0.0
      %336 = vmatpush1.xpose.msra.mxu0 0.0
      %337 = vmatprep.subr.mxu0 0.0
      %338 = vmatpush1.xpose.msra.mxu0 0.0
      %339 = vmatprep.subr.mxu0 0.0
      %340 = vmatpush1.xpose.msra.mxu0 0.0
      %341 = vmatprep.subr.mxu0 0.0
      %342 = vmatpush1.xpose.msra.mxu0 0.0
      %343 = vmatprep.subr.mxu0 0.0
      %344 = vmatpush1.xpose.msra.mxu0 0.0
      %345 = vmatprep.subr.mxu0 0.0
      %346 = vmatpush1.xpose.msra.mxu0 0.0
      %347 = vmatprep.subr.mxu0 0.0
      %348 = vmatpush1.xpose.msra.mxu0 0.0
      %349 = vmatprep.subr.mxu0 0.0
      %350 = vmatpush1.xpose.msra.mxu0 0.0
      %351 = vmatprep.subr.mxu0 0.0
      %352 = vmatpush1.xpose.msra.mxu0 0.0
      %353 = vmatprep.subr.mxu0 0.0
      %354 = vmatpush1.xpose.msra.mxu0 0.0
      %355 = vmatprep.subr.mxu0 0.0
      %356 = vmatpush1.xpose.msra.mxu0 0.0
      %357 = vmatprep.subr.mxu0 0.0
      %358 = vmatpush1.xpose.msra.mxu0 0.0
      %359 = vmatprep.subr.mxu0 0.0
      %360 = vmatpush1.xpose.msra.mxu0 0.0
      %361 = vmatprep.subr.mxu0 0.0
      %362 = vmatpush1.xpose.msra.mxu0 0.0
      %363 = vmatprep.subr.mxu0 0.0
      %364 = vmatpush1.xpose.msra.mxu0 0.0
      %365 = vmatprep.subr.mxu0 0.0
      %366 = vmatpush1.xpose.msra.mxu0 0.0
      %367 = vmatprep.subr.mxu0 0.0
      %368 = vmatpush1.xpose.msra.mxu0 0.0
      %369 = vmatprep.subr.mxu0 0.0
      %370 = vmatpush1.xpose.msra.mxu0 0.0
      %371 = vmatprep.subr.mxu0 0.0
      %372 = vmatpush1.xpose.msra.mxu0 0.0
      %373 = vmatprep.subr.mxu0 0.0
      %374 = vmatpush1.xpose.msra.mxu0 0.0
      %375 = vmatprep.subr.mxu0 0.0
      %376 = vmatpush1.xpose.msra.mxu0 0.0
      %377 = vmatprep.subr.mxu0 0.0
      %378 = vmatpush1.xpose.msra.mxu0 0.0
      %379 = vmatprep.subr.mxu0 0.0
      %380 = vmatpush1.xpose.msra.mxu0 0.0
      %381 = vmatprep.subr.mxu0 0.0
      %382 = vmatpush1.xpose.msra.mxu0 0.0
      %383 = vmatprep.subr.mxu0 0.0
      %384 = vmatpush1.xpose.msra.mxu0 0.0
      %385 = vmatprep.subr.mxu0 0.0
      %386 = vmatpush1.xpose.msra.mxu0 0.0
      %387 = vmatprep.mubr.f32.mxu0 0.0
      %388 = vmatmul.mubr.f32.gmra.mrb[0].mxu0 %v294
      %v389 = vpop.f32.mrb[0].mxu0
      %v390 = vadd.f32 0.0, %v389
      %v391 = vpop.f32.mrb[0].mxu0
      %392 = vmatprep.mubr.f32.mxu0 0.0
      %393 = vmatmul.mubr.f32.gmra.mrb[0].mxu0 %v297
      %v394 = vpop.f32.mrb[0].mxu0
      %v395 = vadd.f32 0.0, %v394
      %v396 = vpop.f32.mrb[0].mxu0
      %397 = vmatprep.mubr.f32.mxu0 0.0
      %398 = vmatmul.mubr.f32.gmra.mrb[0].mxu0 %v300
      %v399 = vpop.f32.mrb[0].mxu0
      %v400 = vadd.f32 0.0, %v399
      %v401 = vpop.f32.mrb[0].mxu0
      %402 = vmatprep.mubr.f32.mxu0 0.0
      %403 = vmatmul.mubr.f32.gmra.mrb[0].mxu0 %v303
      %v404 = vpop.f32.mrb[0].mxu0
      %v405 = vadd.f32 0.0, %v404
      %v406 = vpop.f32.mrb[0].mxu0
      %407 = vmatprep.mubr.f32.mxu0 0.0
      %408 = vmatmul.mubr.f32.gmra.mrb[0].mxu0 %v306
      %v409 = vpop.f32.mrb[0].mxu0
      %v410 = vadd.f32 0.0, %v409
      %v411 = vpop.f32.mrb[0].mxu0
      %412 = vdwg.mxu0
      %vm413 = vcmask 326656
      %414 = vst.msk [vmem:[%s170] sm:$0xff] %vm413, %v390
      %415 = vst.msk [vmem:[%s170 + $0x8] sm:$0xff] %vm413, %v395
      %416 = vst.msk [vmem:[%s170 + $0x10] sm:$0xff] %vm413, %v400
      %417 = vst.msk [vmem:[%s170 + $0x18] sm:$0xff] %vm413, %v405
      %418 = vst.msk [vmem:[%s170 + $0x20] sm:$0xff] %vm413, %v410
      %p419 = scmp.lt.s32.totalorder %s14, 127
      %s420 = scalar_select %p419, %s14, 127
      %s421 = smul.addr %s420, 5
      %s422 = smul.addr %s421, 8
      %s423 = scalar_lea.vmem %s3, %s422
      // Predicated region
      $region33: #{tpu_custom_call.1} parent=31 // pred_check
        %p424 = pneg %p100
      $region34: #{tpu_custom_call.1} parent=31 // pred_check_branch
        %426 = sbr.rel (%p424) target = $region36
      $region35: #{tpu_custom_call.1} parent=31 // pred_region
        _
      $region36: #{tpu_custom_call.1} parent=31 // pred_fallthru
        _
    $region32: #{tpu_custom_call.1} parent=5 // pred_fallthru
      _
    %p427 = scmp.le.s32.totalorder 2, %s9
    // Predicated region
    $region37: #{tpu_custom_call.1} parent=5 // pred_check
      %p428 = pneg %p427
    $region38: #{tpu_custom_call.1} parent=5 // pred_check_branch
      %430 = sbr.rel (%p428) target = $region40
    $region39: #{tpu_custom_call.1} parent=5 // pred_region
      %s431 = ssub.s32 %s9, 2
      // Predicated region
      $region41: #{tpu_custom_call.1} parent=39 // pred_check
        %p432 = pneg %p106
      $region42: #{tpu_custom_call.1} parent=39 // pred_check_branch
        %434 = sbr.rel (%p432) target = $region44
      $region43: #{tpu_custom_call.1} parent=39 // pred_region
        %p435 = scmp.lt.s32.totalorder %s15, 127
        %s436 = scalar_select %p435, %s15, 127
        %s437 = smul.addr %s436, 5
        %s438 = smul.addr %s437, 8
        %s439 = scalar_lea.vmem %s3, %s438
      $region44: #{tpu_custom_call.1} parent=39 // pred_fallthru
        _
    $region40: #{tpu_custom_call.1} parent=5 // pred_fallthru
      _
  $region6: #{tpu_custom_call.1} parent=0 // loop_footer
    %s13 = sadd.s32 1, %s9
  $region7: #{tpu_custom_call.1} parent=0 // loop_footer_branch
    %8 = sbr.rel target = $region3
  $region8: #{tpu_custom_call.1} parent=0 // loop_exit
    _

</llo_original>
